<compile_context>
chip_gen: v7x
topology: tpu7x:2x2x1
jax: 0.10.0
libtpu: 0.0.40
codegen_flags: <defaults>
</compile_context>

<pallas_src>
import math
import jax
import jax.numpy as jnp
from jax.experimental import pallas as pl
from jax.experimental.pallas import tpu as pltpu


def _round_up(a, b):
    return ((a + b - 1) // b) * b


def _ffn_kernel(x_ref, w1_ref, b1_ref, w2_ref, b2_ref, o_ref, acc_ref):
    # x_ref:  (tm, emb)    activation tile (same tile for every hidden chunk j)
    # w1_ref: (emb, tn)    streamed slab of first-layer weight
    # b1_ref: (1, tn)      matching slab of first-layer bias
    # w2_ref: (tn, emb)    streamed slab of second-layer weight
    # b2_ref: (1, emb)     second-layer bias (added once, at finalize)
    # o_ref:  (tm, emb)    output tile (resident across the j axis)
    # acc_ref:(tm, emb)    f32 accumulator scratch
    j = pl.program_id(1)

    @pl.when(j == 0)
    def _init():
        acc_ref[...] = jnp.zeros_like(acc_ref)

    # First matmul chunk: (tm, emb) @ (emb, tn) -> (tm, tn), f32 accumulation.
    h = jnp.dot(x_ref[...], w1_ref[...], preferred_element_type=jnp.float32)
    h = h + b1_ref[...].astype(jnp.float32)
    # SiLU in f32 (EUP handles the sigmoid's exp; free slot when MXU-bound).
    h = h * jax.nn.sigmoid(h)

    # Second matmul chunk accumulates into the f32 scratch accumulator.
    acc_ref[...] += jnp.dot(h.astype(w2_ref.dtype), w2_ref[...],
                            preferred_element_type=jnp.float32)

    @pl.when(j == pl.num_programs(1) - 1)
    def _finalize():
        o_ref[...] = (acc_ref[...] + b2_ref[...].astype(jnp.float32)
                      ).astype(o_ref.dtype)


def _clamp_tn_for_vmem(emb, tm, tn, hidden_pad, itemsize, budget_bytes):
    """Shrink tn (multiples of 128) until the estimated VMEM footprint fits."""
    tn = min(tn, hidden_pad)
    tn = max(128, (tn // 128) * 128)
    while tn > 128:
        # double-buffered w1/w2 slabs + double-buffered x & out tiles + b1 slab
        # + b2 + f32 accumulator
        slabs = 2 * 2 * emb * tn * itemsize
        tiles = 2 * 2 * tm * emb * itemsize
        bias = 2 * tn * itemsize + emb * itemsize
        acc = tm * emb * 4
        if slabs + tiles + bias + acc <= budget_bytes:
            break
        tn -= 128
    return max(128, min(tn, hidden_pad))


def feedforward_pallas(x, w1, b1, w2, b2, *, tm=256, tn=512,
                       vmem_limit_bytes=None):
    """x: (..., emb). w1: (emb, hidden), b1: (hidden,), w2: (hidden, emb), b2: (emb,).

    tm: activation-row tile (256 is a good default; 128-256 on v5e).
    tn: hidden-chunk width cap (auto-clamped against a conservative VMEM
        budget so the same defaults are safe on v7x's 64 MiB VMEM).
    """
    orig_shape = x.shape
    emb = orig_shape[-1]
    hidden = w1.shape[1]
    x2d = x.reshape(-1, emb)
    M = x2d.shape[0]

    # Clamp tiles to the (padded) problem size, keeping sublane/lane alignment.
    tm_eff = min(tm, _round_up(M, 8))
    hidden_pad128 = _round_up(hidden, 128)
    budget = vmem_limit_bytes if vmem_limit_bytes is not None else 28 * 1024 * 1024
    tn_eff = _clamp_tn_for_vmem(emb, tm_eff, tn, hidden_pad128,
                                jnp.dtype(x.dtype).itemsize, budget)

    M_pad = _round_up(M, tm_eff)
    H_pad = _round_up(hidden, tn_eff)

    if M_pad != M:
        x2d = jnp.pad(x2d, ((0, M_pad - M), (0, 0)))
    if H_pad != hidden:
        # Zero-padded hidden units contribute nothing: SiLU(0 + 0) = 0 and the
        # corresponding rows of w2 are zero.
        w1 = jnp.pad(w1, ((0, 0), (0, H_pad - hidden)))
        b1 = jnp.pad(b1, ((0, H_pad - hidden),))
        w2 = jnp.pad(w2, ((0, H_pad - hidden), (0, 0)))

    b1_2d = b1.reshape(1, H_pad)
    b2_2d = b2.reshape(1, emb)

    grid = (M_pad // tm_eff, H_pad // tn_eff)

    # Advisory cost hint for XLA scheduling around the custom call.
    bytes_in = (x2d.size * x2d.dtype.itemsize
                + w1.size * w1.dtype.itemsize + b1.size * b1.dtype.itemsize
                + w2.size * w2.dtype.itemsize + b2.size * b2.dtype.itemsize)
    bytes_out = M_pad * emb * x.dtype.itemsize
    cost = pl.CostEstimate(
        flops=4 * M_pad * emb * H_pad,          # two matmuls
        transcendentals=M_pad * H_pad,          # sigmoid
        bytes_accessed=bytes_in + bytes_out)

    out = pl.pallas_call(
        _ffn_kernel,
        out_shape=jax.ShapeDtypeStruct((M_pad, emb), x.dtype),
        grid_spec=pltpu.PrefetchScalarGridSpec(
            num_scalar_prefetch=0,
            grid=grid,
            in_specs=[
                pl.BlockSpec((tm_eff, emb), lambda i, j: (i, 0)),   # x tile
                pl.BlockSpec((emb, tn_eff), lambda i, j: (0, j)),   # w1 slab
                pl.BlockSpec((1, tn_eff), lambda i, j: (0, j)),     # b1 slab
                pl.BlockSpec((tn_eff, emb), lambda i, j: (j, 0)),   # w2 slab
                pl.BlockSpec((1, emb), lambda i, j: (0, 0)),        # b2
            ],
            out_specs=pl.BlockSpec((tm_eff, emb), lambda i, j: (i, 0)),
            scratch_shapes=[pltpu.VMEM((tm_eff, emb), jnp.float32)],
        ),
        compiler_params=pltpu.CompilerParams(
            dimension_semantics=("parallel", "arbitrary"),
            vmem_limit_bytes=vmem_limit_bytes),
        cost_estimate=cost,
    )(x2d, w1, b1_2d, w2, b2_2d)

    out = out[:M]
    return out.reshape(orig_shape)


def init_params(key, emb_dim, dtype=jnp.float32):
    """Deterministic init mimicking nn.Linear's default (uniform +/- 1/sqrt(fan_in))."""
    hidden = 4 * emb_dim
    k1, k2, k3, k4 = jax.random.split(key, 4)
    bound1 = 1.0 / math.sqrt(emb_dim)
    bound2 = 1.0 / math.sqrt(hidden)
    # stored as (in, out) for the kernel; equivalent to transposing torch's (out, in)
    w1 = jax.random.uniform(k1, (emb_dim, hidden), dtype, -bound1, bound1)
    b1 = jax.random.uniform(k2, (hidden,), dtype, -bound1, bound1)
    w2 = jax.random.uniform(k3, (hidden, emb_dim), dtype, -bound2, bound2)
    b2 = jax.random.uniform(k4, (emb_dim,), dtype, -bound2, bound2)
    return w1, b1, w2, b2


def feedforward_ref(x, w1, b1, w2, b2):
    h = x @ w1 + b1
    h = h * jax.nn.sigmoid(h)
    return h @ w2 + b2


if __name__ == "__main__":
    key = jax.random.PRNGKey(0)

    # --- Test 1: small canonical shapes, f32, exact match to reference -----
    batch, seq, emb_dim = 2, 8, 32          # hidden = 4 * emb_dim = 128
    kx, kp = jax.random.split(key)
    x = jax.random.normal(kx, (batch, seq, emb_dim), jnp.float32)
    w1, b1, w2, b2 = init_params(kp, emb_dim)

    y = feedforward_pallas(x, w1, b1, w2, b2)
    y = jax.block_until_ready(y)
    y_ref = feedforward_ref(x, w1, b1, w2, b2)
    assert y.shape == (batch, seq, emb_dim)
    assert jnp.allclose(y, y_ref, atol=1e-5, rtol=1e-5), "f32 mismatch vs reference"

    # --- Test 2: ragged M (not a multiple of the tile) and padded hidden ---
    batch2, seq2, emb2 = 3, 5, 48           # M = 15, hidden = 192 (padded to 256)
    kx2, kp2 = jax.random.split(kp)
    x2 = jax.random.normal(kx2, (batch2, seq2, emb2), jnp.float32)
    p2 = init_params(kp2, emb2)
    y2 = jax.block_until_ready(feedforward_pallas(x2, *p2))
    y2_ref = feedforward_ref(x2, *p2)
    assert y2.shape == (batch2, seq2, emb2)
    assert jnp.allclose(y2, y2_ref, atol=1e-5, rtol=1e-5), "ragged mismatch vs reference"

    # --- Test 3: bf16 weights/activations with f32 accumulation ------------
    xb = x.astype(jnp.bfloat16)
    w1b, b1b, w2b, b2b = (w1.astype(jnp.bfloat16), b1.astype(jnp.bfloat16),
                          w2.astype(jnp.bfloat16), b2.astype(jnp.bfloat16))
    yb = jax.block_until_ready(feedforward_pallas(xb, w1b, b1b, w2b, b2b))
    assert yb.dtype == jnp.bfloat16
    assert jnp.allclose(yb.astype(jnp.float32), y_ref, atol=1e-1, rtol=1e-1), \
        "bf16 mismatch vs f32 reference"

    print("KERNEL_OK")
</pallas_src>

<mosaic_0001>
module attributes {stable_mosaic.version = 11 : i64} {
  func.func @_ffn_kernel(%arg0: i32, %arg1: i32, %arg2: memref<16x32xf32, #tpu.memory_space<vmem>>, %arg3: memref<32x128xf32, #tpu.memory_space<vmem>>, %arg4: memref<1x128xf32, #tpu.memory_space<vmem>>, %arg5: memref<128x32xf32, #tpu.memory_space<vmem>>, %arg6: memref<1x32xf32, #tpu.memory_space<vmem>>, %arg7: memref<16x32xf32, #tpu.memory_space<vmem>>, %arg8: memref<16x32xf32, #tpu.memory_space<vmem>>) attributes {dimension_semantics = [#tpu.dimension_semantics<parallel>, #tpu.dimension_semantics<arbitrary>], iteration_bounds = array<i64: 1, 1>, scalar_prefetch = 0 : i64, scratch_operands = 1 : i64, tpu.core_type = #tpu.core_type<tc>, window_params = [{transform_indices = @transform_0, window_bounds = array<i64: 16, 32>}, {transform_indices = @transform_1, window_bounds = array<i64: 32, 128>}, {transform_indices = @transform_2, window_bounds = array<i64: 1, 128>}, {transform_indices = @transform_3, window_bounds = array<i64: 128, 32>}, {pipeline_mode = #tpu.pipeline_mode<synchronous>, transform_indices = @transform_4, window_bounds = array<i64: 1, 32>}, {transform_indices = @transform_5, window_bounds = array<i64: 16, 32>}]} {
    %c0_i32 = arith.constant 0 : i32
    %0 = arith.cmpi eq, %arg1, %c0_i32 : i32
    %1 = arith.extui %0 : i1 to i32
    %c0_i32_0 = arith.constant 0 : i32
    %2 = arith.cmpi ne, %1, %c0_i32_0 : i32
    scf.if %2 {
      %cst_16 = arith.constant 0.000000e+00 : f32
      %23 = vector.broadcast %cst_16 : f32 to vector<16x32xf32>
      %c0_17 = arith.constant 0 : index
      %c0_18 = arith.constant 0 : index
      %24 = vector.load %arg8[%c0_17, %c0_18] : memref<16x32xf32, #tpu.memory_space<vmem>>, vector<16x32xf32>
      tpu.vector_store %arg8[%c0_17, %c0_18], %23 {strides = array<i32>} : memref<16x32xf32, #tpu.memory_space<vmem>>, vector<16x32xf32>,
    } else {
    }
    %c0 = arith.constant 0 : index
    %c0_1 = arith.constant 0 : index
    %3 = vector.load %arg2[%c0, %c0_1] : memref<16x32xf32, #tpu.memory_space<vmem>>, vector<16x32xf32>
    %c0_2 = arith.constant 0 : index
    %c0_3 = arith.constant 0 : index
    %4 = vector.load %arg3[%c0_2, %c0_3] : memref<32x128xf32, #tpu.memory_space<vmem>>, vector<32x128xf32>
    %cst = arith.constant dense<0.000000e+00> : vector<16x128xf32>
    %5 = tpu.matmul %3, %4, %cst {dimension_numbers = #tpu.dot_dimension_numbers<[1], [0], [0], [1], [0, 0, 1, 1], [], []>} : vector<16x32xf32>, vector<32x128xf32>, vector<16x128xf32> -> vector<16x128xf32>
    %c0_4 = arith.constant 0 : index
    %c0_5 = arith.constant 0 : index
    %6 = vector.load %arg4[%c0_4, %c0_5] : memref<1x128xf32, #tpu.memory_space<vmem>>, vector<1x128xf32>
    %7 = vector.broadcast %6 : vector<1x128xf32> to vector<16x128xf32>
    %8 = arith.addf %5, %7 : vector<16x128xf32>
    %9 = arith.negf %8 : vector<16x128xf32>
    %10 = math.exp %9 : vector<16x128xf32>
    %cst_6 = arith.constant 1.000000e+00 : f32
    %11 = vector.broadcast %cst_6 : f32 to vector<16x128xf32>
    %12 = arith.addf %11, %10 : vector<16x128xf32>
    %13 = arith.divf %11, %12 : vector<16x128xf32>
    %14 = arith.mulf %8, %13 : vector<16x128xf32>
    %c0_7 = arith.constant 0 : index
    %c0_8 = arith.constant 0 : index
    %15 = vector.load %arg8[%c0_7, %c0_8] : memref<16x32xf32, #tpu.memory_space<vmem>>, vector<16x32xf32>
    %c0_9 = arith.constant 0 : index
    %c0_10 = arith.constant 0 : index
    %16 = vector.load %arg5[%c0_9, %c0_10] : memref<128x32xf32, #tpu.memory_space<vmem>>, vector<128x32xf32>
    %cst_11 = arith.constant dense<0.000000e+00> : vector<16x32xf32>
    %17 = tpu.matmul %14, %16, %cst_11 {dimension_numbers = #tpu.dot_dimension_numbers<[1], [0], [0], [1], [0, 0, 1, 1], [], []>} : vector<16x128xf32>, vector<128x32xf32>, vector<16x32xf32> -> vector<16x32xf32>
    %18 = arith.addf %15, %17 : vector<16x32xf32>
    %c0_12 = arith.constant 0 : index
    %c0_13 = arith.constant 0 : index
    %19 = vector.load %arg8[%c0_12, %c0_13] : memref<16x32xf32, #tpu.memory_space<vmem>>, vector<16x32xf32>
    tpu.vector_store %arg8[%c0_12, %c0_13], %18 {strides = array<i32>} : memref<16x32xf32, #tpu.memory_space<vmem>>, vector<16x32xf32>,
    %c0_i32_14 = arith.constant 0 : i32
    %20 = arith.cmpi eq, %arg1, %c0_i32_14 : i32
    %21 = arith.extui %20 : i1 to i32
    %c0_i32_15 = arith.constant 0 : i32
    %22 = arith.cmpi ne, %21, %c0_i32_15 : i32
    scf.if %22 {
      %c0_16 = arith.constant 0 : index
      %c0_17 = arith.constant 0 : index
      %23 = vector.load %arg8[%c0_16, %c0_17] : memref<16x32xf32, #tpu.memory_space<vmem>>, vector<16x32xf32>
      %c0_18 = arith.constant 0 : index
      %c0_19 = arith.constant 0 : index
      %24 = vector.load %arg6[%c0_18, %c0_19] : memref<1x32xf32, #tpu.memory_space<vmem>>, vector<1x32xf32>
      %25 = vector.broadcast %24 : vector<1x32xf32> to vector<16x32xf32>
      %26 = arith.addf %23, %25 : vector<16x32xf32>
      %c0_20 = arith.constant 0 : index
      %c0_21 = arith.constant 0 : index
      %27 = vector.load %arg7[%c0_20, %c0_21] : memref<16x32xf32, #tpu.memory_space<vmem>>, vector<16x32xf32>
      tpu.vector_store %arg7[%c0_20, %c0_21], %26 {strides = array<i32>} : memref<16x32xf32, #tpu.memory_space<vmem>>, vector<16x32xf32>,
    } else {
    }
    return
  }
  func.func @transform_0(%arg0: i32, %arg1: i32) -> (i32, i32) {
    %c0_i32 = arith.constant 0 : i32
    %c0_i32_0 = arith.constant 0 : i32
    return %arg0, %c0_i32 : i32, i32
  }
  func.func @transform_1(%arg0: i32, %arg1: i32) -> (i32, i32) {
    %c0_i32 = arith.constant 0 : i32
    %c0_i32_0 = arith.constant 0 : i32
    return %c0_i32, %arg1 : i32, i32
  }
  func.func @transform_2(%arg0: i32, %arg1: i32) -> (i32, i32) {
    %c0_i32 = arith.constant 0 : i32
    %c0_i32_0 = arith.constant 0 : i32
    return %c0_i32, %arg1 : i32, i32
  }
  func.func @transform_3(%arg0: i32, %arg1: i32) -> (i32, i32) {
    %c0_i32 = arith.constant 0 : i32
    %c0_i32_0 = arith.constant 0 : i32
    return %arg1, %c0_i32 : i32, i32
  }
  func.func @transform_4(%arg0: i32, %arg1: i32) -> (i32, i32) {
    %c0_i32 = arith.constant 0 : i32
    %c0_i32_0 = arith.constant 0 : i32
    %c0_i32_1 = arith.constant 0 : i32
    return %c0_i32, %c0_i32_0 : i32, i32
  }
  func.func @transform_5(%arg0: i32, %arg1: i32) -> (i32, i32) {
    %c0_i32 = arith.constant 0 : i32
    %c0_i32_0 = arith.constant 0 : i32
    return %arg0, %c0_i32 : i32, i32
  }
}

</mosaic_0001>

<llo_original>
// kernel: tpu_custom_call.1
$region0: #{tpu_custom_call.1}
  #allocation0 [shape = 'u32[]', space=smem, size = 0x4, offset = 0x4, fixed_abs, tag = 'smem constant byte address 0x4 - core index']
  #allocation1 [shape = 'u32[144,128]{1,0:T(1,128)}', space=vmem, size = 0x12000, scoped, tag = 'internal scratch']
  #allocation2 [shape = 'f32[16,32]{1,0:T(8,128)}', space=vmem, size = 0x2000, scoped, tag = 'scratch operand']
  %s0 = inlined_call_operand.vmem [shape: f32[16,32], index: 0, kind: input, shape index: {}]
  %s1 = inlined_call_operand.vmem [shape: f32[32,128], index: 1, kind: input, shape index: {}]
  %s2 = inlined_call_operand.vmem [shape: f32[1,128], index: 2, kind: input, shape index: {}]
  %s3 = inlined_call_operand.vmem [shape: f32[128,32], index: 3, kind: input, shape index: {}]
  %s4 = inlined_call_operand.vmem [shape: f32[1,32], index: 4, kind: input, shape index: {}]
  %s5 = inlined_call_operand.hbm [shape: f32[16,32], index: 5, kind: output, shape index: {}]
  %s6 = sld [smem:[#allocation0]]
  $region38: #{tpu_custom_call.1} parent=0
    _
  %s8 = ssub.s32 1, %s6
  %s9 = scalar_select 0, %s8, %s6
  $region1: #{tpu_custom_call.1} parent=0
    #allocation3 [shape = 'u8[8192]{0}', space=vmem, size = 0x2000, scoped, tag = 'output window, operand 0, single buffered']
    #allocation4 [shape = 's32[1]{0}', space=sflag, size = 0x4, scoped, tag = 'scoped memory for tpu_custom_call.1']
    %10 = vsyncpa [#allocation4], 0
    // Predicated region
    $region2: #{tpu_custom_call.1} parent=1 // pred_check
      _
    $region3: #{tpu_custom_call.1} parent=1 // pred_check_branch
      %12 = sbr.rel (0) target = $region5
    $region4: #{tpu_custom_call.1} parent=1 // pred_region
      _
    $region5: #{tpu_custom_call.1} parent=1 // pred_fallthru
      _
    // Predicated region
    $region6: #{tpu_custom_call.1} parent=1 // pred_check
      _
    $region7: #{tpu_custom_call.1} parent=1 // pred_check_branch
      %14 = sbr.rel (0) target = $region9
    $region8: #{tpu_custom_call.1} parent=1 // pred_region
      _
    $region9: #{tpu_custom_call.1} parent=1 // pred_fallthru
      _
    // Predicated region
    $region10: #{tpu_custom_call.1} parent=1 // pred_check
      _
    $region11: #{tpu_custom_call.1} parent=1 // pred_check_branch
      %16 = sbr.rel (0) target = $region13
    $region12: #{tpu_custom_call.1} parent=1 // pred_region
      _
    $region13: #{tpu_custom_call.1} parent=1 // pred_fallthru
      _
    // Predicated region
    $region14: #{tpu_custom_call.1} parent=1 // pred_check
      _
    $region15: #{tpu_custom_call.1} parent=1 // pred_check_branch
      %18 = sbr.rel (0) target = $region17
    $region16: #{tpu_custom_call.1} parent=1 // pred_region
      _
    $region17: #{tpu_custom_call.1} parent=1 // pred_fallthru
      _
    // Predicated region
    $region18: #{tpu_custom_call.1} parent=1 // pred_check
      _
    $region19: #{tpu_custom_call.1} parent=1 // pred_check_branch
      %20 = sbr.rel (0) target = $region21
    $region20: #{tpu_custom_call.1} parent=1 // pred_region
      _
    $region21: #{tpu_custom_call.1} parent=1 // pred_fallthru
      _
    %p21 = scmp.eq.s32.totalorder 0, 0
    // Predicated region
    $region22: #{tpu_custom_call.1} parent=1 // pred_check
      %p22 = pneg %p21
    $region23: #{tpu_custom_call.1} parent=1 // pred_check_branch
      %24 = sbr.rel (%p22) target = $region25
    $region24: #{tpu_custom_call.1} parent=1 // pred_region
      %vm25 = vcmask 261120
      %26 = vst.msk [vmem:[#allocation2] sm:$0xff] %vm25, 0.0
      %27 = vst.msk [vmem:[#allocation2 + $0x8] sm:$0xff] %vm25, 0.0
    $region25: #{tpu_custom_call.1} parent=1 // pred_fallthru
      _
    %v28 = vld [vmem:[%s0] sm:$0xff]
    %v29 = vld [vmem:[%s0 + $0x8] sm:$0xff]
    %v30 = vld [vmem:[%s1] sm:$0xff]
    %v31 = vld [vmem:[%s1 + $0x8] sm:$0xff]
    %v32 = vld [vmem:[%s1 + $0x10] sm:$0xff]
    %v33 = vld [vmem:[%s1 + $0x18] sm:$0xff]
    %v34 = vld [vmem:[%s2] sm:$0x1]
    %v36 = vlaneseq
    %v37 = vshrl.u32 %v36, 7
    %v38 = vsub.s32 0, %v37
    %v39 = vrot.slane %v34, %v38
    %vm41 = vcmask 261120
    %v43 = vsel %vm41, %v28, 0
    %v46 = vsel %vm41, %v29, 0
    %48 = vmatprep.subr.mxu0 0.0
    %49 = vmatpush1.msra.mxu0 %v30
    %50 = vmatprep.subr.mxu0 0.0
    %51 = vmatpush1.msra.mxu0 %v31
    %52 = vmatprep.subr.mxu0 0.0
    %53 = vmatpush1.msra.mxu0 %v32
    %54 = vmatprep.subr.mxu0 0.0
    %55 = vmatpush1.msra.mxu0 %v33
    %56 = vmatprep.subr.mxu0 0.0
    %57 = vmatpush1.msra.mxu0 0.0
    %58 = vmatprep.subr.mxu0 0.0
    %59 = vmatpush1.msra.mxu0 0.0
    %60 = vmatprep.subr.mxu0 0.0
    %61 = vmatpush1.msra.mxu0 0.0
    %62 = vmatprep.subr.mxu0 0.0
    %63 = vmatpush1.msra.mxu0 0.0
    %64 = vmatprep.subr.mxu0 0.0
    %65 = vmatpush1.msra.mxu0 0.0
    %66 = vmatprep.subr.mxu0 0.0
    %67 = vmatpush1.msra.mxu0 0.0
    %68 = vmatprep.subr.mxu0 0.0
    %69 = vmatpush1.msra.mxu0 0.0
    %70 = vmatprep.subr.mxu0 0.0
    %71 = vmatpush1.msra.mxu0 0.0
    %72 = vmatprep.subr.mxu0 0.0
    %73 = vmatpush1.msra.mxu0 0.0
    %74 = vmatprep.subr.mxu0 0.0
    %75 = vmatpush1.msra.mxu0 0.0
    %76 = vmatprep.subr.mxu0 0.0
    %77 = vmatpush1.msra.mxu0 0.0
    %78 = vmatprep.subr.mxu0 0.0
    %79 = vmatpush1.msra.mxu0 0.0
    %80 = vmatprep.subr.mxu0 0.0
    %81 = vmatpush1.msra.mxu0 0.0
    %82 = vmatprep.subr.mxu0 0.0
    %83 = vmatpush1.msra.mxu0 0.0
    %84 = vmatprep.subr.mxu0 0.0
    %85 = vmatpush1.msra.mxu0 0.0
    %86 = vmatprep.subr.mxu0 0.0
    %87 = vmatpush1.msra.mxu0 0.0
    %88 = vmatprep.subr.mxu0 0.0
    %89 = vmatpush1.msra.mxu0 0.0
    %90 = vmatprep.subr.mxu0 0.0
    %91 = vmatpush1.msra.mxu0 0.0
    %92 = vmatprep.subr.mxu0 0.0
    %93 = vmatpush1.msra.mxu0 0.0
    %94 = vmatprep.subr.mxu0 0.0
    %95 = vmatpush1.msra.mxu0 0.0
    %96 = vmatprep.subr.mxu0 0.0
    %97 = vmatpush1.msra.mxu0 0.0
    %98 = vmatprep.subr.mxu0 0.0
    %99 = vmatpush1.msra.mxu0 0.0
    %100 = vmatprep.subr.mxu0 0.0
    %101 = vmatpush1.msra.mxu0 0.0
    %102 = vmatprep.subr.mxu0 0.0
    %103 = vmatpush1.msra.mxu0 0.0
    %104 = vmatprep.subr.mxu0 0.0
    %105 = vmatpush1.msra.mxu0 0.0
    %106 = vmatprep.subr.mxu0 0.0
    %107 = vmatpush1.msra.mxu0 0.0
    %108 = vmatprep.subr.mxu0 0.0
    %109 = vmatpush1.msra.mxu0 0.0
    %110 = vmatprep.subr.mxu0 0.0
    %111 = vmatpush1.msra.mxu0 0.0
    %112 = vmatprep.mubr.f32.mxu0 0.0
    %113 = vmatmul.mubr.f32.gmra.mrb[0].mxu0 %v43
    %v114 = vpop.f32.mrb[0].mxu0
    %v115 = vadd.f32 %v39, %v114
    %v116 = vpop.f32.mrb[0].mxu0
    %117 = vmatprep.mubr.f32.mxu0 0.0
    %118 = vmatmul.mubr.f32.gmra.mrb[0].mxu0 %v46
    %v119 = vpop.f32.mrb[0].mxu0
    %v120 = vadd.f32 %v39, %v119
    %v121 = vpop.f32.mrb[0].mxu0
    %122 = vdwg.mxu0
    %v123 = vxor.u32 %v115, 2147483648
    %v124 = vxor.u32 %v120, 2147483648
    %v125 = vmul.f32 %v123, 1.442695
    %v126 = vpow.pop %v125
    %v127 = vmul.f32 %v124, 1.442695
    %v128 = vpow.pop %v127
    %v129 = vadd.f32 %v126, 1.0
    %v130 = vadd.f32 %v128, 1.0
    %v131 = vrcp.pop %v129
    %v132 = vmul.f32 1.0, %v131
    %v133 = vrcp.pop %v130
    %v134 = vmul.f32 1.0, %v133
    %v135 = vmul.f32 %v115, %v132
    %v136 = vmul.f32 %v120, %v134
    %v137 = vld [vmem:[#allocation2] sm:$0xff]
    %v138 = vld [vmem:[#allocation2 + $0x8] sm:$0xff]
    %v139 = vld [vmem:[%s3] sm:$0xff]
    %v140 = vld [vmem:[%s3 + $0x8] sm:$0xff]
    %v141 = vld [vmem:[%s3 + $0x10] sm:$0xff]
    %v142 = vld [vmem:[%s3 + $0x18] sm:$0xff]
    %v143 = vld [vmem:[%s3 + $0x20] sm:$0xff]
    %v144 = vld [vmem:[%s3 + $0x28] sm:$0xff]
    %v145 = vld [vmem:[%s3 + $0x30] sm:$0xff]
    %v146 = vld [vmem:[%s3 + $0x38] sm:$0xff]
    %v147 = vld [vmem:[%s3 + $0x40] sm:$0xff]
    %v148 = vld [vmem:[%s3 + $0x48] sm:$0xff]
    %v149 = vld [vmem:[%s3 + $0x50] sm:$0xff]
    %v150 = vld [vmem:[%s3 + $0x58] sm:$0xff]
    %v151 = vld [vmem:[%s3 + $0x60] sm:$0xff]
    %v152 = vld [vmem:[%s3 + $0x68] sm:$0xff]
    %v153 = vld [vmem:[%s3 + $0x70] sm:$0xff]
    %v154 = vld [vmem:[%s3 + $0x78] sm:$0xff]
    %155 = vmatprep.subr.mxu0 0.0
    %156 = vmatpush1.msra.mxu0 %v139
    %157 = vmatprep.subr.mxu0 0.0
    %158 = vmatpush1.msra.mxu0 %v140
    %159 = vmatprep.subr.mxu0 0.0
    %160 = vmatpush1.msra.mxu0 %v141
    %161 = vmatprep.subr.mxu0 0.0
    %162 = vmatpush1.msra.mxu0 %v142
    %163 = vmatprep.subr.mxu0 0.0
    %164 = vmatpush1.msra.mxu0 %v143
    %165 = vmatprep.subr.mxu0 0.0
    %166 = vmatpush1.msra.mxu0 %v144
    %167 = vmatprep.subr.mxu0 0.0
    %168 = vmatpush1.msra.mxu0 %v145
    %169 = vmatprep.subr.mxu0 0.0
    %170 = vmatpush1.msra.mxu0 %v146
    %171 = vmatprep.subr.mxu0 0.0
    %172 = vmatpush1.msra.mxu0 %v147
    %173 = vmatprep.subr.mxu0 0.0
    %174 = vmatpush1.msra.mxu0 %v148
    %175 = vmatprep.subr.mxu0 0.0
    %176 = vmatpush1.msra.mxu0 %v149
    %177 = vmatprep.subr.mxu0 0.0
    %178 = vmatpush1.msra.mxu0 %v150
    %179 = vmatprep.subr.mxu0 0.0
    %180 = vmatpush1.msra.mxu0 %v151
    %181 = vmatprep.subr.mxu0 0.0
    %182 = vmatpush1.msra.mxu0 %v152
    %183 = vmatprep.subr.mxu0 0.0
    %184 = vmatpush1.msra.mxu0 %v153
    %185 = vmatprep.subr.mxu0 0.0
    %186 = vmatpush1.msra.mxu0 %v154
    %187 = vmatprep.subr.mxu0 0.0
    %188 = vmatpush1.msra.mxu0 0.0
    %189 = vmatprep.subr.mxu0 0.0
    %190 = vmatpush1.msra.mxu0 0.0
    %191 = vmatprep.subr.mxu0 0.0
    %192 = vmatpush1.msra.mxu0 0.0
    %193 = vmatprep.subr.mxu0 0.0
    %194 = vmatpush1.msra.mxu0 0.0
    %195 = vmatprep.subr.mxu0 0.0
    %196 = vmatpush1.msra.mxu0 0.0
    %197 = vmatprep.subr.mxu0 0.0
    %198 = vmatpush1.msra.mxu0 0.0
    %199 = vmatprep.subr.mxu0 0.0
    %200 = vmatpush1.msra.mxu0 0.0
    %201 = vmatprep.subr.mxu0 0.0
    %202 = vmatpush1.msra.mxu0 0.0
    %203 = vmatprep.subr.mxu0 0.0
    %204 = vmatpush1.msra.mxu0 0.0
    %205 = vmatprep.subr.mxu0 0.0
    %206 = vmatpush1.msra.mxu0 0.0
    %207 = vmatprep.subr.mxu0 0.0
    %208 = vmatpush1.msra.mxu0 0.0
    %209 = vmatprep.subr.mxu0 0.0
    %210 = vmatpush1.msra.mxu0 0.0
    %211 = vmatprep.subr.mxu0 0.0
    %212 = vmatpush1.msra.mxu0 0.0
    %213 = vmatprep.subr.mxu0 0.0
    %214 = vmatpush1.msra.mxu0 0.0
    %215 = vmatprep.subr.mxu0 0.0
    %216 = vmatpush1.msra.mxu0 0.0
    %217 = vmatprep.subr.mxu0 0.0
    %218 = vmatpush1.msra.mxu0 0.0
    %219 = vmatprep.mubr.f32.mxu0 0.0
    %220 = vmatmul.mubr.f32.gmra.mrb[0].mxu0 %v135
    %v221 = vpop.f32.mrb[0].mxu0
    %v222 = vadd.f32 0.0, %v221
    %v223 = vpop.f32.mrb[0].mxu0
    %224 = vmatprep.mubr.f32.mxu0 0.0
    %225 = vmatmul.mubr.f32.gmra.mrb[0].mxu0 %v136
    %v226 = vpop.f32.mrb[0].mxu0
    %v227 = vadd.f32 0.0, %v226
    %v228 = vpop.f32.mrb[0].mxu0
    %229 = vdwg.mxu0
    %v230 = vadd.f32 %v137, %v222
    %v231 = vadd.f32 %v138, %v227
    %232 = vst.msk [vmem:[#allocation2] sm:$0xff] %vm41, %v230
    %233 = vst.msk [vmem:[#allocation2 + $0x8] sm:$0xff] %vm41, %v231
    // Predicated region
    $region26: #{tpu_custom_call.1} parent=1 // pred_check
      %p234 = pneg %p21
    $region27: #{tpu_custom_call.1} parent=1 // pred_check_branch
      %236 = sbr.rel (%p234) target = $region29
    $region28: #{tpu_custom_call.1} parent=1 // pred_region
      %v237 = vld [vmem:[#allocation2] sm:$0xff]
      %v238 = vld [vmem:[#allocation2 + $0x8] sm:$0xff]
      %v239 = vld [vmem:[%s4] sm:$0x1]
      %v241 = vlaneseq
      %v242 = vshrl.u32 %v241, 7
      %v243 = vsub.s32 0, %v242
      %v244 = vrot.slane %v239, %v243
      %v246 = vadd.f32 %v237, %v244
      %v247 = vadd.f32 %v238, %v244
      %248 = vst.msk [vmem:[#allocation3] sm:$0xff] %vm41, %v246
      %249 = vst.msk [vmem:[#allocation3 + $0x8] sm:$0xff] %vm41, %v247
    $region29: #{tpu_custom_call.1} parent=1 // pred_fallthru
      _
    // Predicated region
    $region30: #{tpu_custom_call.1} parent=1 // pred_check
      _
    $region31: #{tpu_custom_call.1} parent=1 // pred_check_branch
      %251 = sbr.rel (0) target = $region33
    $region32: #{tpu_custom_call.1} parent=1 // pred_region
      %s253 = ssub.s32 256, 256
      %254 = vsyncadd [#allocation4], %s253
      %s255 = sshll.u32 [#allocation3], 4
      %s256 = int_to_ptr.vmem [resolvable:$true] %s255
      %261 = dma.vmem_to_hbm [thread:$0]  %s256, 256, %s5, [#allocation4], 128, 128, 8
    $region33: #{tpu_custom_call.1} parent=1 // pred_fallthru
      _
    // Predicated region
    $region34: #{tpu_custom_call.1} parent=1 // pred_check
      _
    $region35: #{tpu_custom_call.1} parent=1 // pred_check_branch
      %263 = sbr.rel (0) target = $region37
    $region36: #{tpu_custom_call.1} parent=1 // pred_region
      %264 = dma.done [#allocation4], 256
    $region37: #{tpu_custom_call.1} parent=1 // pred_fallthru
      _
    %265 = vsyncpa [#allocation4], 1

</llo_original>
